<compile_context>
chip_gen: v6e
topology: v6e:2x2x1
jax: 0.10.0
libtpu: 0.0.40
codegen_flags: <defaults>
</compile_context>

<pallas_src>
import functools

import jax
import jax.numpy as jnp
from jax import lax
from jax.experimental import pallas as pl
from jax.experimental.pallas import tpu as pltpu


def _round_up(x, m):
    return ((x + m - 1) // m) * m


def _combined_loss_kernel(preds_ref, tgt_ref, out_ref, *, total_n, tile_n,
                          smooth, alpha, gamma, focal_alpha):
    pid = pl.program_id(0)

    x = preds_ref[...].astype(jnp.float32)        # (tile_n, C)
    tgt = tgt_ref[...]                            # (tile_n, 1) int32
    c = x.shape[-1]

    # Mask for remainder rows of the last (padded) tile.
    row_ids = pid * tile_n + lax.broadcasted_iota(jnp.int32, (tile_n, 1), 0)
    valid = row_ids < total_n                     # (tile_n, 1) bool

    # Numerically stable log-softmax along the class (lane) axis.
    m = jnp.max(x, axis=-1, keepdims=True)
    shifted = x - m
    exp_shifted = jnp.exp(shifted)
    sumexp = jnp.sum(exp_shifted, axis=-1, keepdims=True)
    log_soft = shifted - jnp.log(sumexp)          # (tile_n, C)

    # In-register one-hot mask of the target class (no HBM one-hot).
    cls_ids = lax.broadcasted_iota(jnp.int32, (tile_n, c), 1)
    tmask = (cls_ids == tgt).astype(jnp.float32)  # (tile_n, C)

    ce = -jnp.sum(log_soft * tmask, axis=-1, keepdims=True)        # (tile_n, 1)
    sum_log_soft = jnp.sum(log_soft, axis=-1, keepdims=True)       # (tile_n, 1)

    # ----- LabelSmoothEntropy (closed form, no smoothed-label matrix) -----
    lb_pos = 1.0 - smooth
    lb_neg = smooth / (c - 1)
    smooth_row = (lb_pos - lb_neg) * ce - lb_neg * sum_log_soft    # (tile_n, 1)

    # ----- FocalLoss -----
    # pt = softmax prob of the target class; reuse exp(shifted) (no exp(-ce)).
    pt = jnp.sum(exp_shifted * tmask, axis=-1, keepdims=True) / sumexp
    one_minus_pt = jnp.maximum(1.0 - pt, 0.0)     # clamp ULP negatives -> no NaN
    if gamma == 2.0:
        focal_factor = jnp.square(one_minus_pt)   # single VPU mul, no exp/log pow
    else:
        focal_factor = jnp.power(one_minus_pt, gamma)
    focal_row = focal_alpha * focal_factor * ce   # (tile_n, 1)

    combined = alpha * smooth_row + (1.0 - alpha) * focal_row
    combined = jnp.where(valid, combined, 0.0)    # drop padded remainder rows

    # Per-tile partial sum; the wrapper divides by the global N.
    out_ref[0] = jnp.sum(combined, axis=0, keepdims=True)          # (1, 1)


def combined_loss(preds, targets, *, smooth=0.1, alpha=0.5, gamma=2.0,
                  focal_alpha=1.0, tile_n=512):
    """preds: [N, C] float logits (any float dtype); targets: [N] int class ids."""
    n, c = preds.shape
    tile_n = _round_up(max(8, min(tile_n, _round_up(n, 8))), 8)
    num_tiles = pl.cdiv(n, tile_n)

    tgt2d = targets.astype(jnp.int32).reshape(n, 1)

    kernel = functools.partial(
        _combined_loss_kernel,
        total_n=n, tile_n=tile_n,
        smooth=float(smooth), alpha=float(alpha),
        gamma=float(gamma), focal_alpha=float(focal_alpha))

    partials = pl.pallas_call(
        kernel,
        out_shape=jax.ShapeDtypeStruct((num_tiles, 1, 1), jnp.float32),
        grid_spec=pltpu.PrefetchScalarGridSpec(
            num_scalar_prefetch=0,
            grid=(num_tiles,),
            in_specs=[
                pl.BlockSpec((tile_n, c), lambda i: (i, 0)),
                pl.BlockSpec((tile_n, 1), lambda i: (i, 0)),
            ],
            out_specs=pl.BlockSpec((1, 1, 1), lambda i: (i, 0, 0)),
        ),
        compiler_params=pltpu.CompilerParams(
            dimension_semantics=("parallel",)),
    )(preds, tgt2d)

    # Tiny final reduce + mean in plain JAX (negligible work).
    return jnp.sum(partials) / n


def _reference(preds, targets, smooth=0.1, alpha=0.5, gamma=2.0, focal_alpha=1.0):
    n, c = preds.shape
    log_soft = jax.nn.log_softmax(preds, axis=1)
    oh = jax.nn.one_hot(targets, c, dtype=jnp.float32)
    smoothed = oh * (1.0 - smooth) + (1.0 - oh) * (smooth / (c - 1))
    smooth_loss = jnp.mean(-jnp.sum(log_soft * smoothed, axis=1))
    ce = -jnp.sum(log_soft * oh, axis=1)
    pt = jnp.exp(-ce)
    focal_loss = jnp.mean(focal_alpha * (1.0 - pt) ** gamma * ce)
    return alpha * smooth_loss + (1.0 - alpha) * focal_loss


if __name__ == "__main__":
    key = jax.random.PRNGKey(0)
    k_preds, k_tgt = jax.random.split(key)
    # Small shapes; N chosen so the grid has 3 steps including a remainder tile.
    N, C = 20, 10
    preds = jax.random.normal(k_preds, (N, C), dtype=jnp.float32)
    targets = jax.random.randint(k_tgt, (N,), 0, C, dtype=jnp.int32)

    loss = combined_loss(preds, targets, tile_n=8)
    jax.block_until_ready(loss)

    ref = _reference(preds, targets)
    assert jnp.allclose(loss, ref, atol=1e-5, rtol=1e-5), (loss, ref)
    print("KERNEL_OK")
</pallas_src>

<mosaic_0001>
module attributes {stable_mosaic.version = 11 : i64} {
  func.func @_combined_loss_kernel(%arg0: i32, %arg1: memref<8x10xf32, #tpu.memory_space<vmem>>, %arg2: memref<8x1xi32, #tpu.memory_space<vmem>>, %arg3: memref<1x1x1xf32, #tpu.memory_space<vmem>>) attributes {dimension_semantics = [#tpu.dimension_semantics<parallel>], iteration_bounds = array<i64: 3>, scalar_prefetch = 0 : i64, scratch_operands = 0 : i64, tpu.core_type = #tpu.core_type<tc>, window_params = [{transform_indices = @transform_0, window_bounds = array<i64: 8, 10>}, {transform_indices = @transform_1, window_bounds = array<i64: 8, 1>}, {transform_indices = @transform_2, window_bounds = array<i64: 1, 1, 1>}]} {
    %c0 = arith.constant 0 : index
    %c0_0 = arith.constant 0 : index
    %0 = vector.load %arg1[%c0, %c0_0] : memref<8x10xf32, #tpu.memory_space<vmem>>, vector<8x10xf32>
    %c0_1 = arith.constant 0 : index
    %c0_2 = arith.constant 0 : index
    %1 = vector.load %arg2[%c0_1, %c0_2] : memref<8x1xi32, #tpu.memory_space<vmem>>, vector<8x1xi32>
    %c8_i32 = arith.constant 8 : i32
    %2 = arith.muli %arg0, %c8_i32 : i32
    %3 = tpu.iota {dimensions = array<i32: 0>} : vector<8x1xi32>
    %4 = vector.broadcast %2 : i32 to vector<8x1xi32>
    %5 = arith.addi %4, %3 : vector<8x1xi32>
    %c20_i32 = arith.constant 20 : i32
    %6 = vector.broadcast %c20_i32 : i32 to vector<8x1xi32>
    %7 = arith.cmpi slt, %5, %6 : vector<8x1xi32>
    %cst = arith.constant dense<0xFF800000> : vector<8xf32>
    %8 = vector.multi_reduction <maximumf>, %0, %cst [1] : vector<8x10xf32> to vector<8xf32>
    %9 = vector.shape_cast %8 : vector<8xf32> to vector<8x1xf32>
    %10 = vector.broadcast %9 : vector<8x1xf32> to vector<8x10xf32>
    %11 = arith.subf %0, %10 : vector<8x10xf32>
    %12 = math.exp %11 : vector<8x10xf32>
    %cst_3 = arith.constant dense<0.000000e+00> : vector<8xf32>
    %13 = vector.multi_reduction <add>, %12, %cst_3 [1] : vector<8x10xf32> to vector<8xf32>
    %14 = vector.shape_cast %13 : vector<8xf32> to vector<8x1xf32>
    %15 = math.log %14 : vector<8x1xf32>
    %16 = vector.broadcast %15 : vector<8x1xf32> to vector<8x10xf32>
    %17 = arith.subf %11, %16 : vector<8x10xf32>
    %18 = tpu.iota {dimensions = array<i32: 1>} : vector<8x10xi32>
    %19 = vector.broadcast %1 : vector<8x1xi32> to vector<8x10xi32>
    %20 = arith.cmpi eq, %18, %19 : vector<8x10xi32>
    %21 = arith.extui %20 : vector<8x10xi1> to vector<8x10xi32>
    %22 = arith.sitofp %21 : vector<8x10xi32> to vector<8x10xf32>
    %23 = arith.mulf %17, %22 : vector<8x10xf32>
    %cst_4 = arith.constant dense<0.000000e+00> : vector<8xf32>
    %24 = vector.multi_reduction <add>, %23, %cst_4 [1] : vector<8x10xf32> to vector<8xf32>
    %25 = vector.shape_cast %24 : vector<8xf32> to vector<8x1xf32>
    %cst_5 = arith.constant 0.000000e+00 : f32
    %26 = vector.broadcast %cst_5 : f32 to vector<8x1xf32>
    %27 = arith.subf %26, %25 : vector<8x1xf32>
    %cst_6 = arith.constant dense<0.000000e+00> : vector<8xf32>
    %28 = vector.multi_reduction <add>, %17, %cst_6 [1] : vector<8x10xf32> to vector<8xf32>
    %29 = vector.shape_cast %28 : vector<8xf32> to vector<8x1xf32>
    %cst_7 = arith.constant 0.888888895 : f32
    %30 = vector.broadcast %cst_7 : f32 to vector<8x1xf32>
    %31 = arith.mulf %30, %27 : vector<8x1xf32>
    %cst_8 = arith.constant 0.0111111114 : f32
    %32 = vector.broadcast %cst_8 : f32 to vector<8x1xf32>
    %33 = arith.mulf %32, %29 : vector<8x1xf32>
    %34 = arith.subf %31, %33 : vector<8x1xf32>
    %35 = arith.mulf %12, %22 : vector<8x10xf32>
    %cst_9 = arith.constant dense<0.000000e+00> : vector<8xf32>
    %36 = vector.multi_reduction <add>, %35, %cst_9 [1] : vector<8x10xf32> to vector<8xf32>
    %37 = vector.shape_cast %36 : vector<8xf32> to vector<8x1xf32>
    %38 = arith.divf %37, %14 : vector<8x1xf32>
    %cst_10 = arith.constant 1.000000e+00 : f32
    %39 = vector.broadcast %cst_10 : f32 to vector<8x1xf32>
    %40 = arith.subf %39, %38 : vector<8x1xf32>
    %cst_11 = arith.constant 0.000000e+00 : f32
    %41 = vector.broadcast %cst_11 : f32 to vector<8x1xf32>
    %42 = arith.maximumf %40, %41 : vector<8x1xf32>
    %43 = arith.mulf %42, %42 : vector<8x1xf32>
    %cst_12 = arith.constant 1.000000e+00 : f32
    %44 = vector.broadcast %cst_12 : f32 to vector<8x1xf32>
    %45 = arith.mulf %44, %43 : vector<8x1xf32>
    %46 = arith.mulf %45, %27 : vector<8x1xf32>
    %cst_13 = arith.constant 5.000000e-01 : f32
    %47 = vector.broadcast %cst_13 : f32 to vector<8x1xf32>
    %48 = arith.mulf %47, %34 : vector<8x1xf32>
    %cst_14 = arith.constant 5.000000e-01 : f32
    %49 = vector.broadcast %cst_14 : f32 to vector<8x1xf32>
    %50 = arith.mulf %49, %46 : vector<8x1xf32>
    %51 = arith.addf %48, %50 : vector<8x1xf32>
    %cst_15 = arith.constant 0.000000e+00 : f32
    %52 = vector.broadcast %cst_15 : f32 to vector<8x1xf32>
    %53 = arith.select %7, %51, %52 : vector<8x1xi1>, vector<8x1xf32>
    %cst_16 = arith.constant dense<0.000000e+00> : vector<1xf32>
    %54 = vector.multi_reduction <add>, %53, %cst_16 [0] : vector<8x1xf32> to vector<1xf32>
    %55 = vector.shape_cast %54 : vector<1xf32> to vector<1x1xf32>
    %c0_17 = arith.constant 0 : index
    %c0_18 = arith.constant 0 : index
    %c0_19 = arith.constant 0 : index
    %56 = vector.load %arg3[%c0_17, %c0_18, %c0_19] : memref<1x1x1xf32, #tpu.memory_space<vmem>>, vector<1x1x1xf32>
    %57 = vector.shape_cast %56 : vector<1x1x1xf32> to vector<1x1xf32>
    %58 = vector.shape_cast %55 : vector<1x1xf32> to vector<1x1x1xf32>
    tpu.vector_store %arg3[%c0_17, %c0_18, %c0_19], %58 {strides = array<i32>} : memref<1x1x1xf32, #tpu.memory_space<vmem>>, vector<1x1x1xf32>,
    return
  }
  func.func @transform_0(%arg0: i32) -> (i32, i32) {
    %c0_i32 = arith.constant 0 : i32
    %c0_i32_0 = arith.constant 0 : i32
    return %arg0, %c0_i32 : i32, i32
  }
  func.func @transform_1(%arg0: i32) -> (i32, i32) {
    %c0_i32 = arith.constant 0 : i32
    %c0_i32_0 = arith.constant 0 : i32
    return %arg0, %c0_i32 : i32, i32
  }
  func.func @transform_2(%arg0: i32) -> (i32, i32, i32) {
    %c0_i32 = arith.constant 0 : i32
    %c0_i32_0 = arith.constant 0 : i32
    %c0_i32_1 = arith.constant 0 : i32
    return %arg0, %c0_i32, %c0_i32_0 : i32, i32, i32
  }
}

</mosaic_0001>

<llo_original>
// kernel: tpu_custom_call.1
$region0: #{tpu_custom_call.1}
  #allocation0 [shape = 'u32[]', space=smem, size = 0x4, offset = 0x4, fixed_abs, tag = 'smem constant byte address 0x4 - core index']
  #allocation1 [shape = 'u32[144,128]{1,0:T(1,128)}', space=vmem, size = 0x12000, scoped, tag = 'internal scratch']
  %s0 = inlined_call_operand.vmem [shape: f32[20,10], index: 0, kind: input, shape index: {}]
  %s1 = inlined_call_operand.vmem [shape: s32[20,1], index: 1, kind: input, shape index: {}]
  %s2 = inlined_call_operand.vmem [shape: f32[3,1,1], index: 2, kind: output, shape index: {}]
  %s3 = sld [smem:[#allocation0]]
  $region41: #{tpu_custom_call.1} parent=0
    _
  %s5 = ssub.s32 1, %s3
  %s6 = scalar_select 0, %s5, %s3
  loop: start=0, step=1, limit=5
  $region2: #{tpu_custom_call.1} parent=0 // loop_pre_header
    _
  $region3: #{tpu_custom_call.1} parent=0 // loop_header
    %s8 = sphi 0, %s12
    %p9 = scmp.ge.s32.totalorder %s8, 5
    %s18 = sphi 0, %s20
    %s21 = sphi 0, %s18
    %s22 = sphi 0, %s21
    %s38 = sphi 0, %s22
    %s44 = sphi 0, %s46
    %s47 = sphi 0, %s44
    %s48 = sphi 0, %s47
    %s64 = sphi 0, %s48
    %s70 = sphi 0, %s72
    %s73 = sphi 0, %s70
    %s74 = sphi 0, %s73
    %s90 = sphi 0, %s74
  $region4: #{tpu_custom_call.1} parent=0 // loop_header_branch
    %11 = sbr.rel (%p9) target = $region8
  $region5: #{tpu_custom_call.1} parent=0 // loop_body
    %s13 = ssub.s32 %s8, 1
    %s14 = ssub.s32 %s8, 2
    %s15 = sadd.s32 %s8, 1
    %s16 = ssub.s32 %s8, %s15
    %p17 = scmp.eq.s32.totalorder %s16, 0
    %s19 = sadd.s32 %s18, 1
    %s20 = scalar_select %p17, %s18, %s19
    %p23 = pneg %p17
    %p24 = scmp.eq.s32.totalorder %s8, 2
    %p25 = por %p23, %p24
    %p26 = scmp.ne.s32.totalorder %s18, %s21
    %p27 = scmp.eq.s32.totalorder %s8, 0
    %p28 = por %p26, %p27
    %p29 = scmp.ne.s32.totalorder %s18, %s21
    %p30 = scmp.eq.s32.totalorder %s13, 2
    %p31 = por %p29, %p30
    %p32 = scmp.ne.s32.totalorder %s21, %s22
    %p33 = scmp.eq.s32.totalorder %s13, 0
    %p34 = por %p32, %p33
    %p35 = scmp.ne.s32.totalorder %s21, %s22
    %p36 = scmp.eq.s32.totalorder %s14, 2
    %p37 = por %p35, %p36
    %p39 = scmp.ne.s32.totalorder %s22, %s38
    %p40 = scmp.eq.s32.totalorder %s14, 0
    %p41 = por %p39, %p40
    %s42 = ssub.s32 %s8, %s15
    %p43 = scmp.eq.s32.totalorder %s42, 0
    %s45 = sadd.s32 %s44, 1
    %s46 = scalar_select %p43, %s44, %s45
    %p49 = pneg %p43
    %p50 = scmp.eq.s32.totalorder %s8, 2
    %p51 = por %p49, %p50
    %p52 = scmp.ne.s32.totalorder %s44, %s47
    %p53 = scmp.eq.s32.totalorder %s8, 0
    %p54 = por %p52, %p53
    %p55 = scmp.ne.s32.totalorder %s44, %s47
    %p56 = scmp.eq.s32.totalorder %s13, 2
    %p57 = por %p55, %p56
    %p58 = scmp.ne.s32.totalorder %s47, %s48
    %p59 = scmp.eq.s32.totalorder %s13, 0
    %p60 = por %p58, %p59
    %p61 = scmp.ne.s32.totalorder %s47, %s48
    %p62 = scmp.eq.s32.totalorder %s14, 2
    %p63 = por %p61, %p62
    %p65 = scmp.ne.s32.totalorder %s48, %s64
    %p66 = scmp.eq.s32.totalorder %s14, 0
    %p67 = por %p65, %p66
    %s68 = ssub.s32 %s8, %s15
    %p69 = scmp.eq.s32.totalorder %s68, 0
    %s71 = sadd.s32 %s70, 1
    %s72 = scalar_select %p69, %s70, %s71
    %p75 = pneg %p69
    %p76 = scmp.eq.s32.totalorder %s8, 2
    %p77 = por %p75, %p76
    %p78 = scmp.ne.s32.totalorder %s70, %s73
    %p79 = scmp.eq.s32.totalorder %s8, 0
    %p80 = por %p78, %p79
    %p81 = scmp.ne.s32.totalorder %s70, %s73
    %p82 = scmp.eq.s32.totalorder %s13, 2
    %p83 = por %p81, %p82
    %p84 = scmp.ne.s32.totalorder %s73, %s74
    %p85 = scmp.eq.s32.totalorder %s13, 0
    %p86 = por %p84, %p85
    %p87 = scmp.ne.s32.totalorder %s73, %s74
    %p88 = scmp.eq.s32.totalorder %s14, 2
    %p89 = por %p87, %p88
    %p91 = scmp.ne.s32.totalorder %s74, %s90
    %p92 = scmp.eq.s32.totalorder %s14, 0
    %p93 = por %p91, %p92
    %p94 = scmp.le.s32.totalorder 1, %s8
    %p95 = scmp.lt.s32.totalorder %s8, 4
    %p96 = pnand %p94, %p95
    %p97 = pneg %p96
    // Predicated region
    $region9: #{tpu_custom_call.1} parent=5 // pred_check
      _
    $region10: #{tpu_custom_call.1} parent=5 // pred_check_branch
      %99 = sbr.rel (%p96) target = $region12
    $region11: #{tpu_custom_call.1} parent=5 // pred_region
      %s100 = ssub.s32 %s8, 1
    $region12: #{tpu_custom_call.1} parent=5 // pred_fallthru
      _
    %p101 = scmp.lt.s32.totalorder %s8, 3
    // Predicated region
    $region13: #{tpu_custom_call.1} parent=5 // pred_check
      %p102 = pneg %p101
    $region14: #{tpu_custom_call.1} parent=5 // pred_check_branch
      %104 = sbr.rel (%p102) target = $region16
    $region15: #{tpu_custom_call.1} parent=5 // pred_region
      // Predicated region
      $region17: #{tpu_custom_call.1} parent=15 // pred_check
        %p105 = pneg %p28
      $region18: #{tpu_custom_call.1} parent=15 // pred_check_branch
        %107 = sbr.rel (%p105) target = $region20
      $region19: #{tpu_custom_call.1} parent=15 // pred_region
        %p108 = scmp.lt.s32.totalorder %s8, 2
        %s109 = scalar_select %p108, %s8, 2
        %s110 = smul.addr %s109, 8
        %s111 = scalar_lea.vmem %s0, %s110
      $region20: #{tpu_custom_call.1} parent=15 // pred_fallthru
        _
      // Predicated region
      $region21: #{tpu_custom_call.1} parent=15 // pred_check
        %p112 = pneg %p54
      $region22: #{tpu_custom_call.1} parent=15 // pred_check_branch
        %114 = sbr.rel (%p112) target = $region24
      $region23: #{tpu_custom_call.1} parent=15 // pred_region
        %p115 = scmp.lt.s32.totalorder %s8, 2
        %s116 = scalar_select %p115, %s8, 2
        %s117 = smul.addr %s116, 8
        %s118 = scalar_lea.vmem %s1, %s117
      $region24: #{tpu_custom_call.1} parent=15 // pred_fallthru
        _
    $region16: #{tpu_custom_call.1} parent=5 // pred_fallthru
      _
    %p119 = scmp.le.s32.totalorder 1, %s8
    %p120 = scmp.lt.s32.totalorder %s8, 4
    %p121 = pnand %p119, %p120
    %p122 = pneg %p121
    // Predicated region
    $region25: #{tpu_custom_call.1} parent=5 // pred_check
      _
    $region26: #{tpu_custom_call.1} parent=5 // pred_check_branch
      %124 = sbr.rel (%p121) target = $region28
    $region27: #{tpu_custom_call.1} parent=5 // pred_region
      %s125 = ssub.s32 %s8, 1
      %p126 = scmp.lt.s32.totalorder %s13, 2
      %s127 = scalar_select %p126, %s13, 2
      %s128 = smul.addr %s127, 8
      %s129 = scalar_lea.vmem %s0, %s128
      %p130 = pneg %p34
      %p131 = pneg %p31
      %p132 = scmp.lt.s32.totalorder %s13, 2
      %s133 = scalar_select %p132, %s13, 2
      %s134 = smul.addr %s133, 8
      %s135 = scalar_lea.vmem %s1, %s134
      %p136 = pneg %p60
      %p137 = pneg %p57
      %p138 = pneg %p86
      %p139 = pneg %p83
      %p140 = scmp.lt.s32.totalorder %s13, 2
      %s141 = scalar_select %p140, %s13, 2
      %s142 = scalar_lea.vmem %s2, %s141
      %p143 = scmp.lt.s32.totalorder %s13, 2
      %s144 = scalar_select %p143, %s13, 2
      %s145 = smul.addr %s144, 8
      %s146 = scalar_lea.vmem %s0, %s145
      %p147 = scmp.lt.s32.totalorder %s13, 2
      %s148 = scalar_select %p147, %s13, 2
      %s149 = smul.addr %s148, 8
      %s150 = scalar_lea.vmem %s1, %s149
      %p151 = scmp.lt.s32.totalorder %s13, 2
      %s152 = scalar_select %p151, %s13, 2
      %s153 = scalar_lea.vmem %s2, %s152
      %v154 = vld [vmem:[%s146] sm:$0xff]
      %v155 = vld [vmem:[%s150] sm:$0xff]
      %s156 = smul.u32 %s13, 8
      %v157 = vlaneseq
      %v158 = vshrl.u32 %v157, 7
      %v159 = vstv %s156
      %v160 = vadd.s32 %v159, %v158
      %vm161 = vcmp.lt.s32.totalorder %v160, 20
      %vm162 = vcmask 80896
      %v163 = vsel %vm162, %v154, -inf
      %164 = vmax.xlane.f32.xlu0 %v163
      %v165 = vpop.xlane.xlu0 %164
      %v166 = vsub.f32 %v154, %v165
      %v167 = vmul.f32 %v166, 1.442695
      %v168 = vpow.pop %v167
      %v169 = vsel %vm162, %v168, 0.0
      %170 = vadd.xlane.f32.xlu0 %v169
      %v171 = vpop.xlane.xlu0 %170
      %v172 = vlog2.pop %v171
      %v173 = vmul.f32 %v172, 0.6931472
      %v174 = vsub.f32 %v166, %v173
      %v175 = vlaneseq
      %v176 = vand.u32 %v175, 127
      %177 = vset.pattern.permute.xlu0 0
      %178 = vperm.xlu0 %177, %v155
      %v179 = vpop.permute.xlu0 %178
      %vm180 = vcmp.eq.s32.totalorder %v176, %v179
      %v181 = vsel %vm180, 1, 0
      %v182 = vcvt.s32.f32 %v181
      %v183 = vmul.f32 %v174, %v182
      %v184 = vsel %vm162, %v183, 0.0
      %185 = vadd.xlane.f32.xlu0 %v184
      %v186 = vpop.xlane.xlu0 %185
      %v187 = vsub.f32 0.0, %v186
      %v188 = vsel %vm162, %v174, 0.0
      %189 = vadd.xlane.f32.xlu0 %v188
      %v190 = vpop.xlane.xlu0 %189
      %v191 = vmul.f32 %v187, 0.8888889
      %v192 = vmul.f32 %v190, 0.011111111
      %v193 = vsub.f32 %v191, %v192
      %v194 = vmul.f32 %v168, %v182
      %v195 = vsel %vm162, %v194, 0.0
      %196 = vadd.xlane.f32.xlu0 %v195
      %v197 = vpop.xlane.xlu0 %196
      %v198 = vrcp.pop %v171
      %v199 = vmul.f32 %v197, %v198
      %v200 = vsub.f32 1.0, %v199
      %v201 = vmax.f32 %v200, 0.0
      %v202 = vmul.f32 %v201, %v201
      %v203 = vmul.f32 %v202, %v187
      %v204 = vmul.f32 %v193, 0.5
      %v205 = vmul.f32 %v203, 0.5
      %v206 = vadd.f32 %v204, %v205
      %v207 = vsel %vm161, %v206, 0.0
      %v208 = vrot.slane %v207, 4
      %v209 = vadd.f32 %v207, %v208
      %v210 = vrot.slane %v209, 2
      %v211 = vadd.f32 %v209, %v210
      %v212 = vrot.slane %v211, 1
      %v213 = vadd.f32 %v211, %v212
      %vm214 = vcmask 0
      %215 = vst.msk [vmem:[%s153] sm:$0x1] %vm214, %v213
      %p216 = scmp.lt.s32.totalorder %s13, 2
      %s217 = scalar_select %p216, %s13, 2
      %s218 = scalar_lea.vmem %s2, %s217
      // Predicated region
      $region29: #{tpu_custom_call.1} parent=27 // pred_check
        %p219 = pneg %p83
      $region30: #{tpu_custom_call.1} parent=27 // pred_check_branch
        %221 = sbr.rel (%p219) target = $region32
      $region31: #{tpu_custom_call.1} parent=27 // pred_region
        _
      $region32: #{tpu_custom_call.1} parent=27 // pred_fallthru
        _
    $region28: #{tpu_custom_call.1} parent=5 // pred_fallthru
      _
    %p222 = scmp.le.s32.totalorder 2, %s8
    // Predicated region
    $region33: #{tpu_custom_call.1} parent=5 // pred_check
      %p223 = pneg %p222
    $region34: #{tpu_custom_call.1} parent=5 // pred_check_branch
      %225 = sbr.rel (%p223) target = $region36
    $region35: #{tpu_custom_call.1} parent=5 // pred_region
      %s226 = ssub.s32 %s8, 2
      // Predicated region
      $region37: #{tpu_custom_call.1} parent=35 // pred_check
        %p227 = pneg %p89
      $region38: #{tpu_custom_call.1} parent=35 // pred_check_branch
        %229 = sbr.rel (%p227) target = $region40
      $region39: #{tpu_custom_call.1} parent=35 // pred_region
        %p230 = scmp.lt.s32.totalorder %s14, 2
        %s231 = scalar_select %p230, %s14, 2
        %s232 = scalar_lea.vmem %s2, %s231
      $region40: #{tpu_custom_call.1} parent=35 // pred_fallthru
        _
    $region36: #{tpu_custom_call.1} parent=5 // pred_fallthru
      _
  $region6: #{tpu_custom_call.1} parent=0 // loop_footer
    %s12 = sadd.s32 1, %s8
  $region7: #{tpu_custom_call.1} parent=0 // loop_footer_branch
    %7 = sbr.rel target = $region3
  $region8: #{tpu_custom_call.1} parent=0 // loop_exit
    _

</llo_original>
